<compile_context>
chip_gen: v6e
topology: v6e:2x2x1
jax: 0.10.0
libtpu: 0.0.40
codegen_flags: <defaults>
</compile_context>

<pallas_src>
from functools import partial

import jax
import jax.numpy as jnp
from jax.experimental import pallas as pl
from jax.experimental.pallas import tpu as pltpu

ARGS = {"vector_len": 100}


def _round_up(n, m):
    return ((n + m - 1) // m) * m


def net_kernel(x_ref, wc_ref, bc_ref, o_ref, *, out_valid):
    # x:  [TILE_B, in_features]  (bf16)
    # wc: [in_features, OUT_PAD] (bf16)  -- fused W1 @ W2, zero-padded columns
    # bc: [1, OUT_PAD]           (f32)   -- fused b1 @ W2 + b2, padded columns = -1e30
    # o:  [TILE_B, out_valid]    (f32)
    y = jnp.dot(x_ref[...], wc_ref[...], preferred_element_type=jnp.float32) + bc_ref[...]

    # Numerically stable log_softmax in f32 over the 128-lane logit vreg. Padded lanes
    # carry -1e30 from the bias, so exp() underflows to exactly 0 and they contribute
    # nothing to the normalization.
    m = jnp.max(y, axis=1, keepdims=True)
    z = y - m
    lse = jnp.log(jnp.sum(jnp.exp(z), axis=1, keepdims=True))

    # Store only the valid columns (lane-masked store; 8x fewer HBM bytes than the
    # 128-wide f32 slab).
    o_ref[...] = (z - lse)[:, :out_valid].astype(o_ref.dtype)


def prepare_params(w1_t, b1, w2_t, b2):
    """One-time param prep: fuse the two Linears and pad to a lane-aligned layout.

    w1_t: [in, hidden]; b1: [1, hidden] or [hidden]; w2_t: [hidden, out]; b2: [1, out] or [out].
    Returns (wc_p [in, OUT_PAD] bf16, bc_p [1, OUT_PAD] f32, out_features).
    """
    in_features, hidden = w1_t.shape
    hidden2, out_features = w2_t.shape
    assert hidden == hidden2
    OUT_PAD = _round_up(out_features, 128)

    # Fuse in f32, cast the fused weight to bf16 once (single bf16 rounding step).
    wc = w1_t.astype(jnp.float32) @ w2_t.astype(jnp.float32)                    # [in, out]
    bc = (b1.reshape(1, -1).astype(jnp.float32) @ w2_t.astype(jnp.float32)
          + b2.reshape(1, -1).astype(jnp.float32))                              # [1, out]

    wc_p = (
        jnp.zeros((in_features, OUT_PAD), jnp.bfloat16)
        .at[:, :out_features]
        .set(wc.astype(jnp.bfloat16))
    )
    # Fold the padded-logit mask into the bias: padded columns get -1e30.
    bc_p = jnp.full((1, OUT_PAD), -1e30, jnp.float32).at[:, :out_features].set(bc)
    return wc_p, bc_p, out_features


def net_forward(x, wc_p, bc_p, out_features, *, tile_b=1024):
    """x: [B, in_features] (any float dtype). Returns [B, out_features] log-probs (f32)."""
    B, in_features = x.shape
    in_f2, OUT_PAD = wc_p.shape
    assert in_f2 == in_features

    # Batch tiling: multiple of 16 (native bf16 sublane tile), capped at the padded batch;
    # when the batch is big enough, keep >= 2 grid tiles so v7x's 2 TensorCores share work.
    b16 = _round_up(B, 16)
    tile_b = max(16, (min(tile_b, b16) // 16) * 16)
    if b16 >= 32:
        tile_b = min(tile_b, max(16, _round_up(b16 // 2, 16)))
    B_pad = _round_up(B, tile_b)

    x_p = x.astype(jnp.bfloat16)
    if B_pad != B:
        x_p = jnp.zeros((B_pad, in_features), jnp.bfloat16).at[:B].set(x_p)

    grid = (B_pad // tile_b,)

    cost = pl.CostEstimate(
        flops=2 * B_pad * in_features * OUT_PAD,
        transcendentals=B_pad * OUT_PAD,                    # exp in the softmax
        bytes_accessed=(B_pad * in_features * 2             # x (bf16)
                        + in_features * OUT_PAD * 2         # fused Wc (bf16)
                        + OUT_PAD * 4                       # fused bc (f32)
                        + B_pad * out_features * 4),        # output (f32)
    )

    out = pl.pallas_call(
        partial(net_kernel, out_valid=out_features),
        out_shape=jax.ShapeDtypeStruct((B_pad, out_features), jnp.float32),
        grid=grid,
        in_specs=[
            pl.BlockSpec((tile_b, in_features), lambda i: (i, 0)),   # x: tiled on batch
            pl.BlockSpec((in_features, OUT_PAD), lambda i: (0, 0)),  # fused Wc: resident
            pl.BlockSpec((1, OUT_PAD), lambda i: (0, 0)),            # fused bc: resident
        ],
        out_specs=pl.BlockSpec((tile_b, out_features), lambda i: (i, 0)),
        compiler_params=pltpu.CompilerParams(
            dimension_semantics=("parallel",),  # shards batch tiles over v7x's 2 TCs
        ),
        cost_estimate=cost,
    )(x_p, wc_p, bc_p)

    return out[:B]


def init_params(key, in_features, out_features, vector_len):
    hidden = vector_len - 1  # nn.Linear(in_features, vector_len - 1)
    k1, k2, k3, k4 = jax.random.split(key, 4)
    # Deterministic init mimicking nn.Linear's uniform(-1/sqrt(fan_in), 1/sqrt(fan_in)).
    bound1 = 1.0 / jnp.sqrt(jnp.float32(in_features))
    bound2 = 1.0 / jnp.sqrt(jnp.float32(hidden))
    # Stored already transposed: [in_dim, out_dim].
    w1_t = jax.random.uniform(k1, (in_features, hidden), jnp.float32, -bound1, bound1)
    b1 = jax.random.uniform(k2, (1, hidden), jnp.float32, -bound1, bound1)
    w2_t = jax.random.uniform(k3, (hidden, out_features), jnp.float32, -bound2, bound2)
    b2 = jax.random.uniform(k4, (1, out_features), jnp.float32, -bound2, bound2)
    return w1_t, b1, w2_t, b2


def reference_forward_f32(x, w1_t, b1, w2_t, b2):
    # Full-f32 PyTorch-equivalent semantics (dropout p=0 is identity).
    h = x @ w1_t + b1
    y = h @ w2_t + b2
    return jax.nn.log_softmax(y, axis=1)


def reference_forward_fused_bf16(x, w1_t, b1, w2_t, b2):
    # Matches the kernel's precision policy: fused f32 weights cast once to bf16,
    # bf16 MXU operands with f32 accumulation, f32 bias + softmax.
    wc = (w1_t.astype(jnp.float32) @ w2_t.astype(jnp.float32)).astype(jnp.bfloat16)
    bc = (b1.reshape(1, -1).astype(jnp.float32) @ w2_t.astype(jnp.float32)
          + b2.reshape(1, -1).astype(jnp.float32))
    y = jnp.dot(x.astype(jnp.bfloat16), wc, preferred_element_type=jnp.float32) + bc
    return jax.nn.log_softmax(y, axis=1)


if __name__ == "__main__":
    key = jax.random.PRNGKey(0)
    kx, kp = jax.random.split(key)

    B = 32                       # matches the training script's batch_size
    in_features = 32
    out_features = 16
    vector_len = ARGS["vector_len"]  # hidden = 99 (fused away inside prepare_params)

    x = jax.random.normal(kx, (B, in_features), jnp.float32)
    w1_t, b1, w2_t, b2 = init_params(kp, in_features, out_features, vector_len)

    # One-time param prep (fusion + padding + bf16 cast), then the per-call forward.
    wc_p, bc_p, out_f = prepare_params(w1_t, b1, w2_t, b2)
    out = net_forward(x, wc_p, bc_p, out_f)
    out = jax.block_until_ready(out)

    ref_fused = reference_forward_fused_bf16(x, w1_t, b1, w2_t, b2)
    ref_f32 = reference_forward_f32(x, w1_t, b1, w2_t, b2)

    assert out.shape == (B, out_features)
    assert bool(jnp.all(jnp.isfinite(out)))
    # Tight match against the precision-equivalent fused-bf16 reference...
    assert jnp.allclose(out, ref_fused, atol=2e-3, rtol=2e-3)
    # ...and a loose match against the full-f32 PyTorch-equivalent semantics.
    assert jnp.allclose(out, ref_f32, atol=5e-2, rtol=0.0)

    print("KERNEL_OK")
</pallas_src>

<mosaic_0001>
module attributes {stable_mosaic.version = 11 : i64} {
  func.func @net_kernel(%arg0: i32, %arg1: memref<16x32xbf16, #tpu.memory_space<vmem>>, %arg2: memref<32x128xbf16, #tpu.memory_space<vmem>>, %arg3: memref<1x128xf32, #tpu.memory_space<vmem>>, %arg4: memref<16x16xf32, #tpu.memory_space<vmem>>) attributes {dimension_semantics = [#tpu.dimension_semantics<parallel>], iteration_bounds = array<i64: 2>, scalar_prefetch = 0 : i64, scratch_operands = 0 : i64, tpu.core_type = #tpu.core_type<tc>, window_params = [{transform_indices = @transform_0, window_bounds = array<i64: 16, 32>}, {pipeline_mode = #tpu.pipeline_mode<synchronous>, transform_indices = @transform_1, window_bounds = array<i64: 32, 128>}, {pipeline_mode = #tpu.pipeline_mode<synchronous>, transform_indices = @transform_2, window_bounds = array<i64: 1, 128>}, {transform_indices = @transform_3, window_bounds = array<i64: 16, 16>}]} {
    %c0 = arith.constant 0 : index
    %c0_0 = arith.constant 0 : index
    %0 = vector.load %arg1[%c0, %c0_0] : memref<16x32xbf16, #tpu.memory_space<vmem>>, vector<16x32xbf16>
    %c0_1 = arith.constant 0 : index
    %c0_2 = arith.constant 0 : index
    %1 = vector.load %arg2[%c0_1, %c0_2] : memref<32x128xbf16, #tpu.memory_space<vmem>>, vector<32x128xbf16>
    %cst = arith.constant dense<0.000000e+00> : vector<16x128xf32>
    %2 = tpu.matmul %0, %1, %cst {dimension_numbers = #tpu.dot_dimension_numbers<[1], [0], [0], [1], [0, 0, 1, 1], [], []>} : vector<16x32xbf16>, vector<32x128xbf16>, vector<16x128xf32> -> vector<16x128xf32>
    %c0_3 = arith.constant 0 : index
    %c0_4 = arith.constant 0 : index
    %3 = vector.load %arg3[%c0_3, %c0_4] : memref<1x128xf32, #tpu.memory_space<vmem>>, vector<1x128xf32>
    %4 = vector.broadcast %3 : vector<1x128xf32> to vector<16x128xf32>
    %5 = arith.addf %2, %4 : vector<16x128xf32>
    %cst_5 = arith.constant dense<0xFF800000> : vector<16xf32>
    %6 = vector.multi_reduction <maximumf>, %5, %cst_5 [1] : vector<16x128xf32> to vector<16xf32>
    %7 = vector.shape_cast %6 : vector<16xf32> to vector<16x1xf32>
    %8 = vector.broadcast %7 : vector<16x1xf32> to vector<16x128xf32>
    %9 = arith.subf %5, %8 : vector<16x128xf32>
    %10 = math.exp %9 : vector<16x128xf32>
    %cst_6 = arith.constant dense<0.000000e+00> : vector<16xf32>
    %11 = vector.multi_reduction <add>, %10, %cst_6 [1] : vector<16x128xf32> to vector<16xf32>
    %12 = vector.shape_cast %11 : vector<16xf32> to vector<16x1xf32>
    %13 = math.log %12 : vector<16x1xf32>
    %14 = vector.broadcast %13 : vector<16x1xf32> to vector<16x128xf32>
    %15 = arith.subf %9, %14 : vector<16x128xf32>
    %16 = vector.extract_strided_slice %15 {offsets = [0, 0], sizes = [16, 16], strides = [1, 1]} : vector<16x128xf32> to vector<16x16xf32>
    %c0_7 = arith.constant 0 : index
    %c0_8 = arith.constant 0 : index
    %17 = vector.load %arg4[%c0_7, %c0_8] : memref<16x16xf32, #tpu.memory_space<vmem>>, vector<16x16xf32>
    tpu.vector_store %arg4[%c0_7, %c0_8], %16 {strides = array<i32>} : memref<16x16xf32, #tpu.memory_space<vmem>>, vector<16x16xf32>,
    return
  }
  func.func @transform_0(%arg0: i32) -> (i32, i32) {
    %c0_i32 = arith.constant 0 : i32
    %c0_i32_0 = arith.constant 0 : i32
    return %arg0, %c0_i32 : i32, i32
  }
  func.func @transform_1(%arg0: i32) -> (i32, i32) {
    %c0_i32 = arith.constant 0 : i32
    %c0_i32_0 = arith.constant 0 : i32
    %c0_i32_1 = arith.constant 0 : i32
    return %c0_i32, %c0_i32_0 : i32, i32
  }
  func.func @transform_2(%arg0: i32) -> (i32, i32) {
    %c0_i32 = arith.constant 0 : i32
    %c0_i32_0 = arith.constant 0 : i32
    %c0_i32_1 = arith.constant 0 : i32
    return %c0_i32, %c0_i32_0 : i32, i32
  }
  func.func @transform_3(%arg0: i32) -> (i32, i32) {
    %c0_i32 = arith.constant 0 : i32
    %c0_i32_0 = arith.constant 0 : i32
    return %arg0, %c0_i32 : i32, i32
  }
}

</mosaic_0001>

<llo_original>
// kernel: tpu_custom_call.1
$region0: #{tpu_custom_call.1}
  #allocation0 [shape = 'u32[]', space=smem, size = 0x4, offset = 0x4, fixed_abs, tag = 'smem constant byte address 0x4 - core index']
  #allocation1 [shape = 'u32[144,128]{1,0:T(1,128)}', space=vmem, size = 0x12000, scoped, tag = 'internal scratch']
  %s0 = inlined_call_operand.hbm [shape: bf16[32,32], index: 0, kind: input, shape index: {}]
  %s1 = inlined_call_operand.hbm [shape: bf16[32,128], index: 1, kind: input, shape index: {}]
  %s2 = inlined_call_operand.vmem [shape: f32[1,128], index: 2, kind: input, shape index: {}]
  %s3 = inlined_call_operand.vmem [shape: f32[32,16], index: 3, kind: output, shape index: {}]
  %s4 = sld [smem:[#allocation0]]
  $region53: #{tpu_custom_call.1} parent=0
    _
  %s6 = ssub.s32 1, %s4
  %s7 = scalar_select 0, %s6, %s4
  $region1: #{tpu_custom_call.1} parent=0
    #allocation2 [shape = 'u8[8192]{0}', space=vmem, size = 0x2000, scoped, tag = 'input window, operand 0']
    #allocation3 [shape = 's32[2]{0}', space=sflag, size = 0x8, scoped, tag = 'scoped memory for tpu_custom_call.1']
    #allocation4 [shape = 'u8[8192]{0}', space=vmem, size = 0x2000, scoped, tag = 'input window, operand 1, single buffered']
    #allocation5 [shape = 's32[1]{0}', space=sflag, size = 0x4, scoped, tag = 'scoped memory for tpu_custom_call.1']
    %8 = vsyncpa [#allocation3], 0
    %s9 = scalar_lea.sflag [#allocation3], 1
    %10 = vsyncpa %s9, 0
    %11 = vsyncpa [#allocation5], 0
    loop: start=0, step=1, limit=4
    $region2: #{tpu_custom_call.1} parent=1 // loop_pre_header
      _
    $region3: #{tpu_custom_call.1} parent=1 // loop_header
      %s13 = sphi 0, %s17
      %p14 = scmp.ge.s32.totalorder %s13, 4
      %s23 = sphi 0, %s25
      %s26 = sphi 0, %s23
      %s27 = sphi 0, %s26
      %s43 = sphi 0, %s27
      %s47 = sphi 0, %s47
      %s49 = sphi 0, %s47
      %s50 = sphi 0, %s49
      %s64 = sphi 0, %s50
      %s68 = sphi 0, %s68
      %s70 = sphi 0, %s68
      %s71 = sphi 0, %s70
      %s85 = sphi 0, %s71
      %s91 = sphi 0, %s93
      %s94 = sphi 0, %s91
      %s95 = sphi 0, %s94
      %s111 = sphi 0, %s95
    $region4: #{tpu_custom_call.1} parent=1 // loop_header_branch
      %16 = sbr.rel (%p14) target = $region8
    $region5: #{tpu_custom_call.1} parent=1 // loop_body
      %s18 = ssub.s32 %s13, 1
      %s19 = ssub.s32 %s13, 2
      %s20 = sadd.s32 %s13, 1
      %s21 = ssub.s32 %s13, %s20
      %p22 = scmp.eq.s32.totalorder %s21, 0
      %s24 = sadd.s32 %s23, 1
      %s25 = scalar_select %p22, %s23, %s24
      %p28 = pneg %p22
      %p29 = scmp.eq.s32.totalorder %s13, 1
      %p30 = por %p28, %p29
      %p31 = scmp.ne.s32.totalorder %s23, %s26
      %p32 = scmp.eq.s32.totalorder %s13, 0
      %p33 = por %p31, %p32
      %p34 = scmp.ne.s32.totalorder %s23, %s26
      %p35 = scmp.eq.s32.totalorder %s18, 1
      %p36 = por %p34, %p35
      %p37 = scmp.ne.s32.totalorder %s26, %s27
      %p38 = scmp.eq.s32.totalorder %s18, 0
      %p39 = por %p37, %p38
      %p40 = scmp.ne.s32.totalorder %s26, %s27
      %p41 = scmp.eq.s32.totalorder %s19, 1
      %p42 = por %p40, %p41
      %p44 = scmp.ne.s32.totalorder %s27, %s43
      %p45 = scmp.eq.s32.totalorder %s19, 0
      %p46 = por %p44, %p45
      %s48 = sadd.s32 %s47, 1
      %p51 = scmp.eq.s32.totalorder %s13, 1
      %p52 = scmp.ne.s32.totalorder %s47, %s49
      %p53 = scmp.eq.s32.totalorder %s13, 0
      %p54 = por %p52, %p53
      %p55 = scmp.ne.s32.totalorder %s47, %s49
      %p56 = scmp.eq.s32.totalorder %s18, 1
      %p57 = por %p55, %p56
      %p58 = scmp.ne.s32.totalorder %s49, %s50
      %p59 = scmp.eq.s32.totalorder %s18, 0
      %p60 = por %p58, %p59
      %p61 = scmp.ne.s32.totalorder %s49, %s50
      %p62 = scmp.eq.s32.totalorder %s19, 1
      %p63 = por %p61, %p62
      %p65 = scmp.ne.s32.totalorder %s50, %s64
      %p66 = scmp.eq.s32.totalorder %s19, 0
      %p67 = por %p65, %p66
      %s69 = sadd.s32 %s68, 1
      %p72 = scmp.eq.s32.totalorder %s13, 1
      %p73 = scmp.ne.s32.totalorder %s68, %s70
      %p74 = scmp.eq.s32.totalorder %s13, 0
      %p75 = por %p73, %p74
      %p76 = scmp.ne.s32.totalorder %s68, %s70
      %p77 = scmp.eq.s32.totalorder %s18, 1
      %p78 = por %p76, %p77
      %p79 = scmp.ne.s32.totalorder %s70, %s71
      %p80 = scmp.eq.s32.totalorder %s18, 0
      %p81 = por %p79, %p80
      %p82 = scmp.ne.s32.totalorder %s70, %s71
      %p83 = scmp.eq.s32.totalorder %s19, 1
      %p84 = por %p82, %p83
      %p86 = scmp.ne.s32.totalorder %s71, %s85
      %p87 = scmp.eq.s32.totalorder %s19, 0
      %p88 = por %p86, %p87
      %s89 = ssub.s32 %s13, %s20
      %p90 = scmp.eq.s32.totalorder %s89, 0
      %s92 = sadd.s32 %s91, 1
      %s93 = scalar_select %p90, %s91, %s92
      %p96 = pneg %p90
      %p97 = scmp.eq.s32.totalorder %s13, 1
      %p98 = por %p96, %p97
      %p99 = scmp.ne.s32.totalorder %s91, %s94
      %p100 = scmp.eq.s32.totalorder %s13, 0
      %p101 = por %p99, %p100
      %p102 = scmp.ne.s32.totalorder %s91, %s94
      %p103 = scmp.eq.s32.totalorder %s18, 1
      %p104 = por %p102, %p103
      %p105 = scmp.ne.s32.totalorder %s94, %s95
      %p106 = scmp.eq.s32.totalorder %s18, 0
      %p107 = por %p105, %p106
      %p108 = scmp.ne.s32.totalorder %s94, %s95
      %p109 = scmp.eq.s32.totalorder %s19, 1
      %p110 = por %p108, %p109
      %p112 = scmp.ne.s32.totalorder %s95, %s111
      %p113 = scmp.eq.s32.totalorder %s19, 0
      %p114 = por %p112, %p113
      %p115 = scmp.le.s32.totalorder 1, %s13
      %p116 = scmp.lt.s32.totalorder %s13, 3
      %p117 = pnand %p115, %p116
      %p118 = pneg %p117
      // Predicated region
      $region9: #{tpu_custom_call.1} parent=5 // pred_check
        _
      $region10: #{tpu_custom_call.1} parent=5 // pred_check_branch
        %120 = sbr.rel (%p117) target = $region12
      $region11: #{tpu_custom_call.1} parent=5 // pred_region
        %s121 = ssub.s32 %s13, 1
        // Predicated region
        $region13: #{tpu_custom_call.1} parent=11 // pred_check
          %p122 = pneg %p60
        $region14: #{tpu_custom_call.1} parent=11 // pred_check_branch
          %124 = sbr.rel (%p122) target = $region16
        $region15: #{tpu_custom_call.1} parent=11 // pred_region
          %s126 = ssub.s32 256, 256
          %127 = vsyncadd [#allocation5], %s126
          %s128 = sshll.u32 [#allocation4], 4
          %s129 = int_to_ptr.vmem [resolvable:$true] %s128
          %134 = dma.hbm_to_vmem [thread:$0]  %s1, 256, %s129, [#allocation5], 64, 64, 4
        $region16: #{tpu_custom_call.1} parent=11 // pred_fallthru
          _
        // Predicated region
        $region17: #{tpu_custom_call.1} parent=11 // pred_check
          %p135 = pneg %p81
        $region18: #{tpu_custom_call.1} parent=11 // pred_check_branch
          %137 = sbr.rel (%p135) target = $region20
        $region19: #{tpu_custom_call.1} parent=11 // pred_region
          _
        $region20: #{tpu_custom_call.1} parent=11 // pred_fallthru
          _
      $region12: #{tpu_custom_call.1} parent=5 // pred_fallthru
        _
      %p138 = scmp.lt.s32.totalorder %s13, 2
      // Predicated region
      $region21: #{tpu_custom_call.1} parent=5 // pred_check
        %p139 = pneg %p138
      $region22: #{tpu_custom_call.1} parent=5 // pred_check_branch
        %141 = sbr.rel (%p139) target = $region24
      $region23: #{tpu_custom_call.1} parent=5 // pred_region
        // Predicated region
        $region25: #{tpu_custom_call.1} parent=23 // pred_check
          %p142 = pneg %p33
        $region26: #{tpu_custom_call.1} parent=23 // pred_check_branch
          %144 = sbr.rel (%p142) target = $region28
        $region27: #{tpu_custom_call.1} parent=23 // pred_region
          %s145 = sand.u32 %s23, 1
          %s146 = scalar_lea.sflag [#allocation3], %s145
          %s147 = sand.u32 %s23, 1
          %s148 = smul.addr %s147, 8
          %s149 = scalar_lea.vmem [#allocation2], %s148
          %s150 = smul.u32 2, %s13
          %s152 = ssub.s32 128, 128
          %153 = vsyncadd %s146, %s152
          %s154 = smul.addr %s150, 64
          %s155 = scalar_lea.hbm %s0, %s154
          %s156 = sshll.u32 %s149, 4
          %s157 = int_to_ptr.vmem [resolvable:$true] %s156
          %162 = dma.hbm_to_vmem [thread:$0]  %s155, 128, %s157, %s146, 64, 64, 4
        $region28: #{tpu_custom_call.1} parent=23 // pred_fallthru
          _
      $region24: #{tpu_custom_call.1} parent=5 // pred_fallthru
        _
      %p163 = scmp.le.s32.totalorder 1, %s13
      %p164 = scmp.lt.s32.totalorder %s13, 3
      %p165 = pnand %p163, %p164
      %p166 = pneg %p165
      // Predicated region
      $region29: #{tpu_custom_call.1} parent=5 // pred_check
        _
      $region30: #{tpu_custom_call.1} parent=5 // pred_check_branch
        %168 = sbr.rel (%p165) target = $region32
      $region31: #{tpu_custom_call.1} parent=5 // pred_region
        %s169 = ssub.s32 %s13, 1
        %s170 = sand.u32 %s26, 1
        %s171 = scalar_lea.sflag [#allocation3], %s170
        %s172 = sand.u32 %s26, 1
        %s173 = smul.addr %s172, 8
        %s174 = scalar_lea.vmem [#allocation2], %s173
        // Predicated region
        $region33: #{tpu_custom_call.1} parent=31 // pred_check
          %p175 = pneg %p39
        $region34: #{tpu_custom_call.1} parent=31 // pred_check_branch
          %177 = sbr.rel (%p175) target = $region36
        $region35: #{tpu_custom_call.1} parent=31 // pred_region
          %178 = dma.done %s171, 128
        $region36: #{tpu_custom_call.1} parent=31 // pred_fallthru
          _
        // Predicated region
        $region37: #{tpu_custom_call.1} parent=31 // pred_check
          %p179 = pneg %p60
        $region38: #{tpu_custom_call.1} parent=31 // pred_check_branch
          %181 = sbr.rel (%p179) target = $region40
        $region39: #{tpu_custom_call.1} parent=31 // pred_region
          %182 = dma.done [#allocation5], 256
        $region40: #{tpu_custom_call.1} parent=31 // pred_fallthru
          _
        %s183 = sand.u32 %s26, 1
        %s184 = scalar_lea.sflag [#allocation3], %s183
        %s185 = sand.u32 %s26, 1
        %s186 = smul.addr %s185, 8
        %s187 = scalar_lea.vmem [#allocation2], %s186
        %p188 = pneg %p39
        %p189 = pneg %p36
        %p190 = pneg %p60
        %p191 = pneg %p57
        %p192 = pneg %p81
        %p193 = pneg %p78
        %p194 = pneg %p107
        %p195 = pneg %p104
        %s196 = smul.u32 2, %s18
        %p197 = scmp.lt.s32.totalorder %s196, 3
        %s198 = scalar_select %p197, %s196, 3
        %s199 = smul.addr %s198, 8
        %s200 = scalar_lea.vmem %s3, %s199
        %s201 = smul.u32 2, %s18
        %s202 = smul.u32 2, %s18
        %p203 = scmp.lt.s32.totalorder %s202, 3
        %s204 = scalar_select %p203, %s202, 3
        %s205 = smul.addr %s204, 8
        %s206 = scalar_lea.vmem %s3, %s205
        %s207 = smul.u32 2, %s18
        %v209 = vld [vmem:[%s174] sm:$0xf]
        %v210 = vld [vmem:[%s174 + $0x4] sm:$0xf]
        %v211 = vld [vmem:[#allocation4] sm:$0xf]
        %v212 = vld [vmem:[#allocation4 + $0x4] sm:$0xf]
        %v213 = vld [vmem:[#allocation4 + $0x8] sm:$0xf]
        %v214 = vld [vmem:[#allocation4 + $0xc] sm:$0xf]
        %v215 = vld [vmem:[%s2] sm:$0x1]
        %v217 = vlaneseq
        %v218 = vshrl.u32 %v217, 7
        %v219 = vsub.s32 0, %v218
        %v220 = vrot.slane %v215, %v219
        %v224 = vunpack.c.l.b16 %v209
        %v225 = vunpack.c.l.b16 %v210
        %v226 = vpack.c.b16 %v225, %v224
        %v231 = vunpack.c.l.b16 %v211
        %v232 = vunpack.c.l.b16 %v212
        %v233 = vunpack.c.l.b16 %v213
        %v234 = vunpack.c.l.b16 %v214
        %v235 = vpack.c.b16 %v232, %v231
        %v236 = vpack.c.b16 %v234, %v233
        %vm239 = vcmask 261120
        %v241 = vsel %vm239, %v226, 0
        %243 = vmatprep.subr.bf16.mxu0 0
        %244 = vmatpush1.bf16.msra.mxu0 0
        %245 = vmatprep.subr.bf16.mxu0 0
        %246 = vmatpush1.bf16.msra.mxu0 0
        %247 = vmatprep.subr.bf16.mxu0 0
        %248 = vmatpush1.bf16.msra.mxu0 0
        %249 = vmatprep.subr.bf16.mxu0 0
        %250 = vmatpush1.bf16.msra.mxu0 0
        %251 = vmatprep.subr.bf16.mxu0 0
        %252 = vmatpush1.bf16.msra.mxu0 0
        %253 = vmatprep.subr.bf16.mxu0 0
        %254 = vmatpush1.bf16.msra.mxu0 0
        %255 = vmatprep.subr.bf16.mxu0 0
        %256 = vmatpush1.bf16.msra.mxu0 %v236
        %257 = vmatprep.subr.bf16.mxu0 0
        %258 = vmatpush1.bf16.msra.mxu0 %v235
        %259 = vmatprep.subr.bf16.mxu0 0
        %260 = vmatpush2.bf16.msra.mxu0 0
        %261 = vmatprep.subr.bf16.mxu0 0
        %262 = vmatpush2.bf16.msra.mxu0 0
        %263 = vmatprep.subr.bf16.mxu0 0
        %264 = vmatpush2.bf16.msra.mxu0 0
        %265 = vmatprep.subr.bf16.mxu0 0
        %266 = vmatpush2.bf16.msra.mxu0 0
        %267 = vmatprep.subr.bf16.mxu0 0
        %268 = vmatpush2.bf16.msra.mxu0 0
        %269 = vmatprep.subr.bf16.mxu0 0
        %270 = vmatpush2.bf16.msra.mxu0 0
        %271 = vmatprep.subr.bf16.mxu0 0
        %272 = vmatpush2.bf16.msra.mxu0 0
        %273 = vmatprep.subr.bf16.mxu0 0
        %274 = vmatpush2.bf16.msra.mxu0 0
        %275 = vmatprep.mubr.bf16.mxu0 0
        %276 = vmatmul.mubr.bf16.gmra.mxu0 %v241
        %v277 = vpop.f32.mrf.mxu0
        %v278 = vadd.f32 %v220, %v277
        %v279 = vpop.f32.mrf.mxu0
        %v280 = vpop.f32.mrf.mxu0
        %v281 = vadd.f32 %v220, %v280
        %v282 = vpop.f32.mrf.mxu0
        %283 = vdwg.mxu0
        %284 = vmax.xlane.f32.xlu0 %v278
        %v285 = vpop.xlane.xlu0 %284
        %286 = vmax.xlane.f32.xlu0 %v281
        %v287 = vpop.xlane.xlu0 %286
        %v288 = vsub.f32 %v278, %v285
        %v289 = vsub.f32 %v281, %v287
        %v290 = vmul.f32 %v288, 1.442695
        %v291 = vpow.pop %v290
        %v292 = vmul.f32 %v289, 1.442695
        %v293 = vpow.pop %v292
        %294 = vadd.xlane.f32.xlu0 %v291
        %v295 = vpop.xlane.xlu0 %294
        %296 = vadd.xlane.f32.xlu0 %v293
        %v297 = vpop.xlane.xlu0 %296
        %v298 = vlog2.pop %v295
        %v299 = vmul.f32 %v298, 0.6931472
        %v300 = vlog2.pop %v297
        %v301 = vmul.f32 %v300, 0.6931472
        %v302 = vsub.f32 %v288, %v299
        %v303 = vsub.f32 %v289, %v301
        %vm304 = vcmask 130048
        %305 = vst.msk [vmem:[%s206] sm:$0xff] %vm304, %v302
        %306 = vst.msk [vmem:[%s206 + $0x8] sm:$0xff] %vm304, %v303
        %s307 = smul.u32 2, %s18
        %p308 = scmp.lt.s32.totalorder %s307, 3
        %s309 = scalar_select %p308, %s307, 3
        %s310 = smul.addr %s309, 8
        %s311 = scalar_lea.vmem %s3, %s310
        // Predicated region
        $region41: #{tpu_custom_call.1} parent=31 // pred_check
          %p312 = pneg %p104
        $region42: #{tpu_custom_call.1} parent=31 // pred_check_branch
          %314 = sbr.rel (%p312) target = $region44
        $region43: #{tpu_custom_call.1} parent=31 // pred_region
          %s315 = smul.u32 2, %s18
        $region44: #{tpu_custom_call.1} parent=31 // pred_fallthru
          _
      $region32: #{tpu_custom_call.1} parent=5 // pred_fallthru
        _
      %p316 = scmp.le.s32.totalorder 2, %s13
      // Predicated region
      $region45: #{tpu_custom_call.1} parent=5 // pred_check
        %p317 = pneg %p316
      $region46: #{tpu_custom_call.1} parent=5 // pred_check_branch
        %319 = sbr.rel (%p317) target = $region48
      $region47: #{tpu_custom_call.1} parent=5 // pred_region
        %s320 = ssub.s32 %s13, 2
        // Predicated region
        $region49: #{tpu_custom_call.1} parent=47 // pred_check
          %p321 = pneg %p110
        $region50: #{tpu_custom_call.1} parent=47 // pred_check_branch
          %323 = sbr.rel (%p321) target = $region52
        $region51: #{tpu_custom_call.1} parent=47 // pred_region
          %s324 = smul.u32 2, %s19
          %p325 = scmp.lt.s32.totalorder %s324, 3
          %s326 = scalar_select %p325, %s324, 3
          %s327 = smul.addr %s326, 8
          %s328 = scalar_lea.vmem %s3, %s327
        $region52: #{tpu_custom_call.1} parent=47 // pred_fallthru
          _
      $region48: #{tpu_custom_call.1} parent=5 // pred_fallthru
        _
    $region6: #{tpu_custom_call.1} parent=1 // loop_footer
      %s17 = sadd.s32 1, %s13
    $region7: #{tpu_custom_call.1} parent=1 // loop_footer_branch
      %12 = sbr.rel target = $region3
    $region8: #{tpu_custom_call.1} parent=1 // loop_exit
      _
    %329 = vsyncpa [#allocation3], 1
    %s330 = scalar_lea.sflag [#allocation3], 1
    %331 = vsyncpa %s330, 1
    %332 = vsyncpa [#allocation5], 1

</llo_original>
